<compile_context>
chip_gen: v7x
topology: tpu7x:2x2x1
jax: 0.10.0
libtpu: 0.0.40
codegen_flags: <defaults>
</compile_context>

<pallas_src>
import functools

import numpy as np
import jax
import jax.numpy as jnp
from jax import lax
from jax.experimental import pallas as pl
from jax.experimental.pallas import tpu as pltpu


# ----------------------------------------------------------------------------
# Wrapper-side constants (built once at trace time, resident across grid steps)
# ----------------------------------------------------------------------------
def _build_gather_matrix(h_in, w_in, h_out, w_out):
    """G[r*W+c, t*HWo + i*Wo + j] = 1 iff r == 2i+kh and c == 2j+kw, t=kh*3+kw."""
    hwo = h_out * w_out
    g = np.zeros((h_in * w_in, 9 * hwo), np.float32)
    for kh in range(3):
        for kw in range(3):
            t = kh * 3 + kw
            for i in range(h_out):
                for j in range(w_out):
                    g[(2 * i + kh) * w_in + (2 * j + kw),
                      t * hwo + i * w_out + j] = 1.0
    return g


def _build_shift_masks(h_out, w_out, bt):
    """mask[t, b*HWo + i*Wo + j] = 1 iff source pixel (i+kh-1, j+kw-1) is in-bounds."""
    hwo = h_out * w_out
    m = np.zeros((9, bt * hwo), np.float32)
    ii, jj = np.meshgrid(np.arange(h_out), np.arange(w_out), indexing="ij")
    for kh in range(3):
        for kw in range(3):
            t = kh * 3 + kw
            ok = ((ii + kh - 1 >= 0) & (ii + kh - 1 < h_out)
                  & (jj + kw - 1 >= 0) & (jj + kw - 1 < w_out))
            m[t] = np.tile(ok.astype(np.float32).reshape(-1), bt)
    return m


# ----------------------------------------------------------------------------
# Fused kernel (one grid step = one batch tile of Bt elements)
# ----------------------------------------------------------------------------
def _conv_block_kernel(x_ref, g_ref, m_ref, w0_ref, wr_ref, o_ref, col_ref,
                       *, num_rest, h_out, w_out):
    """x_ref : (1, Bt, H*W)            input batch tile        (VMEM)
       g_ref : (H*W, 9*HWo)   f32      stride-2 gather matrix  (VMEM, resident)
       m_ref : (9, Npix)      f32      padding-boundary masks  (VMEM, resident)
       w0_ref: (C, 10)        f32      block-0 weights|bias    (VMEM, resident)
       wr_ref: (nr, C, 9C+1)  f32      stride-1 weights|bias   (VMEM, resident)
       o_ref : (1, C, Npix)            output batch tile       (VMEM)
       col_ref:(9C+1, Npix)   f32      im2col scratch          (VMEM scratch)
    """
    f32 = jnp.float32
    c_out = o_ref.shape[1]
    npix = o_ref.shape[2]
    bt = x_ref.shape[1]
    hwo = h_out * w_out
    pad = w_out + 1                      # max |lane shift| for padding=1 taps

    # ---- Block 0: Conv2d(1, C, 3, stride=2, padding=0) + ReLU ---------------
    # One gather matmul produces all 9 stride-2 patch planes; rows are then
    # scattered into the im2col scratch in (tap, b*HWo + pixel) layout so the
    # 9-tap contraction (+ bias) is a single MXU matmul.
    x = x_ref[0].astype(f32)                                       # (Bt, H*W)
    yall = jnp.dot(x, g_ref[...], preferred_element_type=f32)      # (Bt, 9*HWo)
    for t in range(9):
        for b in range(bt):
            col_ref[pl.ds(t, 1), pl.ds(b * hwo, hwo)] = (
                yall[b:b + 1, t * hwo:(t + 1) * hwo])
    col_ref[pl.ds(9, 1), :] = jnp.ones((1, npix), f32)             # bias row
    a = jnp.dot(w0_ref[...], col_ref[pl.ds(0, 10), :],
                preferred_element_type=f32)                        # (C, Npix)
    a = jnp.maximum(a, 0.0)

    if num_rest:
        masks = m_ref[...]                                         # (9, Npix)
        col_ref[pl.ds(9 * c_out, 1), :] = jnp.ones((1, npix), f32)  # bias row

    # ---- Blocks 1..nb-1: Conv2d(C, C, 3, stride=1, padding=1) + ReLU --------
    # The 3x3 halo is a zero-filled lane shift of the flattened image
    # (concat + static slice) masked at image boundaries; the whole (ci, kh, kw)
    # contraction is ONE matmul per layer against the VMEM weight matrix.
    for l in range(num_rest):
        apad = jnp.concatenate(
            [jnp.zeros((c_out, pad), f32), a, jnp.zeros((c_out, pad), f32)],
            axis=1)                                                # (C, Npix+2p)
        for t in range(9):
            kh, kw = t // 3, t % 3
            off = (kh - 1) * w_out + (kw - 1)
            shifted = apad[:, pad + off: pad + off + npix]         # (C, Npix)
            col_ref[pl.ds(t * c_out, c_out), :] = shifted * masks[t:t + 1, :]
        a = jnp.dot(wr_ref[l], col_ref[...], preferred_element_type=f32)
        a = jnp.maximum(a, 0.0)

    o_ref[0] = a.astype(o_ref.dtype)


# ----------------------------------------------------------------------------
# Wrapper (single pallas_call for the whole block chain)
# ----------------------------------------------------------------------------
def conv2d_block_forward(x, w0, b0, w_rest=None, b_rest=None):
    """x: (N, 1, H, W); w0: (C, 1, 3, 3); b0: (C,);
    w_rest: (nb-1, C, C, 3, 3) or None; b_rest: (nb-1, C) or None."""
    n, c_in, h_in, w_in = x.shape
    assert c_in == 1, "Conv2dBlock B0 expects a single input channel"
    c_out = int(w0.shape[0])
    h_out = (h_in - 3) // 2 + 1
    w_out = (w_in - 3) // 2 + 1
    hwo = h_out * w_out
    num_rest = 0 if w_rest is None else int(w_rest.shape[0])

    # Batch tile: largest divisor of n (<= 8) that keeps the grid length >= 2
    # (v7x has two TensorCores); n == 1 degenerates to a single step.
    bt = 1
    for d in range(1, min(n, 8) + 1):
        if n % d == 0 and (n // d >= 2 or n == 1):
            bt = d
    num_tiles = n // bt
    npix = bt * hwo

    # Constants & weight matrices (resident across grid steps).
    g_mat = jnp.asarray(_build_gather_matrix(h_in, w_in, h_out, w_out))
    masks = jnp.asarray(_build_shift_masks(h_out, w_out, bt))
    w0_aug = jnp.concatenate(
        [w0.reshape(c_out, 9).astype(jnp.float32),
         b0.reshape(c_out, 1).astype(jnp.float32)], axis=1)        # (C, 10)
    if num_rest:
        wr = jnp.transpose(w_rest.astype(jnp.float32), (0, 1, 3, 4, 2))
        wr = wr.reshape(num_rest, c_out, 9 * c_out)
        wr_aug = jnp.concatenate(
            [wr, b_rest.reshape(num_rest, c_out, 1).astype(jnp.float32)],
            axis=2)                                                # (nr, C, 9C+1)
    else:
        wr_aug = jnp.zeros((1, c_out, 9 * c_out + 1), jnp.float32)

    x3 = x.reshape(num_tiles, bt, h_in * w_in)

    kernel = functools.partial(_conv_block_kernel, num_rest=num_rest,
                               h_out=h_out, w_out=w_out)

    flops_per_step = (2 * bt * h_in * w_in * 9 * hwo          # gather matmul
                      + 2 * c_out * 10 * npix                 # block-0 matmul
                      + num_rest * 2 * c_out * (9 * c_out + 1) * npix)
    bytes_accessed = 4 * (x.size + n * c_out * hwo + g_mat.size + masks.size
                          + w0_aug.size + wr_aug.size)

    out = pl.pallas_call(
        kernel,
        out_shape=jax.ShapeDtypeStruct((num_tiles, c_out, npix), x.dtype),
        grid=(num_tiles,),
        in_specs=[
            pl.BlockSpec((1, bt, h_in * w_in), lambda i: (i, 0, 0)),
            pl.BlockSpec(g_mat.shape, lambda i: (0, 0)),
            pl.BlockSpec(masks.shape, lambda i: (0, 0)),
            pl.BlockSpec(w0_aug.shape, lambda i: (0, 0)),
            pl.BlockSpec(wr_aug.shape, lambda i: (0, 0, 0)),
        ],
        out_specs=pl.BlockSpec((1, c_out, npix), lambda i: (i, 0, 0)),
        scratch_shapes=[pltpu.VMEM((9 * c_out + 1, npix), jnp.float32)],
        compiler_params=pltpu.CompilerParams(
            dimension_semantics=("parallel",),
            vmem_limit_bytes=32 * 1024 * 1024),
        cost_estimate=pl.CostEstimate(
            flops=int(num_tiles * flops_per_step), transcendentals=0,
            bytes_accessed=int(bytes_accessed)),
    )(x3, g_mat, masks, w0_aug, wr_aug)

    out = out.reshape(num_tiles, c_out, bt, h_out, w_out)
    out = jnp.transpose(out, (0, 2, 1, 3, 4)).reshape(n, c_out, h_out, w_out)
    return out


# ----------------------------------------------------------------------------
# Conv2dBlock equivalent (mode='conv', is_widen=True -> rand init, ReLU/conv)
# ----------------------------------------------------------------------------
class Conv2dBlockPallas:
    def __init__(self, num_of_blocks=1, num_of_channels=1, std=0.02, key=None):
        assert isinstance(num_of_blocks, int) and num_of_blocks >= 1
        self.num_of_blocks = num_of_blocks
        self.num_of_channels = num_of_channels
        if key is None:
            key = jax.random.PRNGKey(0)
        weights, biases = [], []
        for i in range(num_of_blocks):
            key, kw, kb = jax.random.split(key, 3)
            c_in = 1 if i == 0 else num_of_channels
            # apply_rand_init: uniform(-std, std) for weights and biases
            weights.append(jax.random.uniform(
                kw, (num_of_channels, c_in, 3, 3), jnp.float32,
                minval=-std, maxval=std))
            biases.append(jax.random.uniform(
                kb, (num_of_channels,), jnp.float32, minval=-std, maxval=std))
        self.weights = weights
        self.biases = biases
        if num_of_blocks > 1:
            self.w_rest = jnp.stack(weights[1:], axis=0)   # (nb-1, C, C, 3, 3)
            self.b_rest = jnp.stack(biases[1:], axis=0)    # (nb-1, C)
        else:
            self.w_rest = None
            self.b_rest = None

    def __call__(self, x):
        # x: (N, 1, H, W) NCHW, matching the PyTorch module.
        return conv2d_block_forward(x, self.weights[0], self.biases[0],
                                    self.w_rest, self.b_rest)


# ----------------------------------------------------------------------------
# Pure-JAX reference (for correctness check)
# ----------------------------------------------------------------------------
def reference_forward(x, weights, biases):
    h = lax.conv_general_dilated(
        x, weights[0], window_strides=(2, 2), padding='VALID',
        dimension_numbers=('NCHW', 'OIHW', 'NCHW'))
    h = jax.nn.relu(h + biases[0][None, :, None, None])
    for i in range(1, len(weights)):
        h = lax.conv_general_dilated(
            h, weights[i], window_strides=(1, 1), padding=[(1, 1), (1, 1)],
            dimension_numbers=('NCHW', 'OIHW', 'NCHW'))
        h = jax.nn.relu(h + biases[i][None, :, None, None])
    return h


if __name__ == "__main__":
    key = jax.random.PRNGKey(0)
    kx, kp = jax.random.split(key)

    # small shapes: batch=2, 1 input channel, 16x16 spatial, 4 hidden channels
    x = jax.random.normal(kx, (2, 1, 16, 16), dtype=jnp.float32)
    model = Conv2dBlockPallas(num_of_blocks=2, num_of_channels=4,
                              std=0.02, key=kp)

    out = jax.block_until_ready(model(x))
    ref = jax.block_until_ready(reference_forward(x, model.weights, model.biases))

    assert out.shape == (2, 4, 7, 7), out.shape
    max_err = float(jnp.max(jnp.abs(out - ref)))
    assert jnp.allclose(out, ref, atol=1e-5, rtol=1e-4), max_err

    print("KERNEL_OK")
</pallas_src>

<mosaic_0001>
module attributes {stable_mosaic.version = 11 : i64} {
  func.func @_conv_block_kernel(%arg0: i32, %arg1: memref<1x1x256xf32, #tpu.memory_space<vmem>>, %arg2: memref<256x441xf32, #tpu.memory_space<vmem>>, %arg3: memref<9x49xf32, #tpu.memory_space<vmem>>, %arg4: memref<4x10xf32, #tpu.memory_space<vmem>>, %arg5: memref<1x4x37xf32, #tpu.memory_space<vmem>>, %arg6: memref<1x4x49xf32, #tpu.memory_space<vmem>>, %arg7: memref<37x49xf32, #tpu.memory_space<vmem>>) attributes {dimension_semantics = [#tpu.dimension_semantics<parallel>], iteration_bounds = array<i64: 2>, scalar_prefetch = 0 : i64, scratch_operands = 1 : i64, tpu.core_type = #tpu.core_type<tc>, window_params = [{transform_indices = @transform_0, window_bounds = array<i64: 1, 1, 256>}, {pipeline_mode = #tpu.pipeline_mode<synchronous>, transform_indices = @transform_1, window_bounds = array<i64: 256, 441>}, {pipeline_mode = #tpu.pipeline_mode<synchronous>, transform_indices = @transform_2, window_bounds = array<i64: 9, 49>}, {pipeline_mode = #tpu.pipeline_mode<synchronous>, transform_indices = @transform_3, window_bounds = array<i64: 4, 10>}, {pipeline_mode = #tpu.pipeline_mode<synchronous>, transform_indices = @transform_4, window_bounds = array<i64: 1, 4, 37>}, {transform_indices = @transform_5, window_bounds = array<i64: 1, 4, 49>}]} {
    %c0 = arith.constant 0 : index
    %c0_0 = arith.constant 0 : index
    %c0_1 = arith.constant 0 : index
    %0 = vector.load %arg1[%c0, %c0_0, %c0_1] : memref<1x1x256xf32, #tpu.memory_space<vmem>>, vector<1x1x256xf32>
    %1 = vector.shape_cast %0 : vector<1x1x256xf32> to vector<1x256xf32>
    %c0_2 = arith.constant 0 : index
    %c0_3 = arith.constant 0 : index
    %2 = vector.load %arg2[%c0_2, %c0_3] : memref<256x441xf32, #tpu.memory_space<vmem>>, vector<256x441xf32>
    %cst = arith.constant dense<0.000000e+00> : vector<1x441xf32>
    %3 = tpu.matmul %1, %2, %cst {dimension_numbers = #tpu.dot_dimension_numbers<[1], [0], [0], [1], [0, 0, 1, 1], [], []>} : vector<1x256xf32>, vector<256x441xf32>, vector<1x441xf32> -> vector<1x441xf32>
    %4 = vector.extract_strided_slice %3 {offsets = [0, 0], sizes = [1, 49], strides = [1, 1]} : vector<1x441xf32> to vector<1x49xf32>
    %c0_4 = arith.constant 0 : index
    %c0_5 = arith.constant 0 : index
    %5 = vector.load %arg7[%c0_4, %c0_5] : memref<37x49xf32, #tpu.memory_space<vmem>>, vector<1x49xf32>
    tpu.vector_store %arg7[%c0_4, %c0_5], %4 {strides = array<i32>} : memref<37x49xf32, #tpu.memory_space<vmem>>, vector<1x49xf32>,
    %6 = vector.extract_strided_slice %3 {offsets = [0, 49], sizes = [1, 49], strides = [1, 1]} : vector<1x441xf32> to vector<1x49xf32>
    %c1 = arith.constant 1 : index
    %c0_6 = arith.constant 0 : index
    %7 = vector.load %arg7[%c1, %c0_6] : memref<37x49xf32, #tpu.memory_space<vmem>>, vector<1x49xf32>
    tpu.vector_store %arg7[%c1, %c0_6], %6 {strides = array<i32>} : memref<37x49xf32, #tpu.memory_space<vmem>>, vector<1x49xf32>,
    %8 = vector.extract_strided_slice %3 {offsets = [0, 98], sizes = [1, 49], strides = [1, 1]} : vector<1x441xf32> to vector<1x49xf32>
    %c2 = arith.constant 2 : index
    %c0_7 = arith.constant 0 : index
    %9 = vector.load %arg7[%c2, %c0_7] : memref<37x49xf32, #tpu.memory_space<vmem>>, vector<1x49xf32>
    tpu.vector_store %arg7[%c2, %c0_7], %8 {strides = array<i32>} : memref<37x49xf32, #tpu.memory_space<vmem>>, vector<1x49xf32>,
    %10 = vector.extract_strided_slice %3 {offsets = [0, 147], sizes = [1, 49], strides = [1, 1]} : vector<1x441xf32> to vector<1x49xf32>
    %c3 = arith.constant 3 : index
    %c0_8 = arith.constant 0 : index
    %11 = vector.load %arg7[%c3, %c0_8] : memref<37x49xf32, #tpu.memory_space<vmem>>, vector<1x49xf32>
    tpu.vector_store %arg7[%c3, %c0_8], %10 {strides = array<i32>} : memref<37x49xf32, #tpu.memory_space<vmem>>, vector<1x49xf32>,
    %12 = vector.extract_strided_slice %3 {offsets = [0, 196], sizes = [1, 49], strides = [1, 1]} : vector<1x441xf32> to vector<1x49xf32>
    %c4 = arith.constant 4 : index
    %c0_9 = arith.constant 0 : index
    %13 = vector.load %arg7[%c4, %c0_9] : memref<37x49xf32, #tpu.memory_space<vmem>>, vector<1x49xf32>
    tpu.vector_store %arg7[%c4, %c0_9], %12 {strides = array<i32>} : memref<37x49xf32, #tpu.memory_space<vmem>>, vector<1x49xf32>,
    %14 = vector.extract_strided_slice %3 {offsets = [0, 245], sizes = [1, 49], strides = [1, 1]} : vector<1x441xf32> to vector<1x49xf32>
    %c5 = arith.constant 5 : index
    %c0_10 = arith.constant 0 : index
    %15 = vector.load %arg7[%c5, %c0_10] : memref<37x49xf32, #tpu.memory_space<vmem>>, vector<1x49xf32>
    tpu.vector_store %arg7[%c5, %c0_10], %14 {strides = array<i32>} : memref<37x49xf32, #tpu.memory_space<vmem>>, vector<1x49xf32>,
    %16 = vector.extract_strided_slice %3 {offsets = [0, 294], sizes = [1, 49], strides = [1, 1]} : vector<1x441xf32> to vector<1x49xf32>
    %c6 = arith.constant 6 : index
    %c0_11 = arith.constant 0 : index
    %17 = vector.load %arg7[%c6, %c0_11] : memref<37x49xf32, #tpu.memory_space<vmem>>, vector<1x49xf32>
    tpu.vector_store %arg7[%c6, %c0_11], %16 {strides = array<i32>} : memref<37x49xf32, #tpu.memory_space<vmem>>, vector<1x49xf32>,
    %18 = vector.extract_strided_slice %3 {offsets = [0, 343], sizes = [1, 49], strides = [1, 1]} : vector<1x441xf32> to vector<1x49xf32>
    %c7 = arith.constant 7 : index
    %c0_12 = arith.constant 0 : index
    %19 = vector.load %arg7[%c7, %c0_12] : memref<37x49xf32, #tpu.memory_space<vmem>>, vector<1x49xf32>
    tpu.vector_store %arg7[%c7, %c0_12], %18 {strides = array<i32>} : memref<37x49xf32, #tpu.memory_space<vmem>>, vector<1x49xf32>,
    %20 = vector.extract_strided_slice %3 {offsets = [0, 392], sizes = [1, 49], strides = [1, 1]} : vector<1x441xf32> to vector<1x49xf32>
    %c8 = arith.constant 8 : index
    %c0_13 = arith.constant 0 : index
    %21 = vector.load %arg7[%c8, %c0_13] : memref<37x49xf32, #tpu.memory_space<vmem>>, vector<1x49xf32>
    tpu.vector_store %arg7[%c8, %c0_13], %20 {strides = array<i32>} : memref<37x49xf32, #tpu.memory_space<vmem>>, vector<1x49xf32>,
    %cst_14 = arith.constant 1.000000e+00 : f32
    %22 = vector.broadcast %cst_14 : f32 to vector<1x49xf32>
    %c9 = arith.constant 9 : index
    %c0_15 = arith.constant 0 : index
    %23 = vector.load %arg7[%c9, %c0_15] : memref<37x49xf32, #tpu.memory_space<vmem>>, vector<1x49xf32>
    tpu.vector_store %arg7[%c9, %c0_15], %22 {strides = array<i32>} : memref<37x49xf32, #tpu.memory_space<vmem>>, vector<1x49xf32>,
    %c0_16 = arith.constant 0 : index
    %c0_17 = arith.constant 0 : index
    %24 = vector.load %arg4[%c0_16, %c0_17] : memref<4x10xf32, #tpu.memory_space<vmem>>, vector<4x10xf32>
    %c0_18 = arith.constant 0 : index
    %c0_19 = arith.constant 0 : index
    %25 = vector.load %arg7[%c0_18, %c0_19] : memref<37x49xf32, #tpu.memory_space<vmem>>, vector<10x49xf32>
    %cst_20 = arith.constant dense<0.000000e+00> : vector<4x49xf32>
    %26 = tpu.matmul %24, %25, %cst_20 {dimension_numbers = #tpu.dot_dimension_numbers<[1], [0], [0], [1], [0, 0, 1, 1], [], []>} : vector<4x10xf32>, vector<10x49xf32>, vector<4x49xf32> -> vector<4x49xf32>
    %cst_21 = arith.constant 0.000000e+00 : f32
    %27 = vector.broadcast %cst_21 : f32 to vector<4x49xf32>
    %28 = arith.maximumf %26, %27 : vector<4x49xf32>
    %c0_22 = arith.constant 0 : index
    %c0_23 = arith.constant 0 : index
    %29 = vector.load %arg3[%c0_22, %c0_23] : memref<9x49xf32, #tpu.memory_space<vmem>>, vector<9x49xf32>
    %cst_24 = arith.constant 1.000000e+00 : f32
    %30 = vector.broadcast %cst_24 : f32 to vector<1x49xf32>
    %c36 = arith.constant 36 : index
    %c0_25 = arith.constant 0 : index
    %31 = vector.load %arg7[%c36, %c0_25] : memref<37x49xf32, #tpu.memory_space<vmem>>, vector<1x49xf32>
    tpu.vector_store %arg7[%c36, %c0_25], %30 {strides = array<i32>} : memref<37x49xf32, #tpu.memory_space<vmem>>, vector<1x49xf32>,
    %cst_26 = arith.constant 0.000000e+00 : f32
    %32 = vector.broadcast %cst_26 : f32 to vector<4x8xf32>
    %cst_27 = arith.constant 0.000000e+00 : f32
    %33 = vector.broadcast %cst_27 : f32 to vector<4x8xf32>
    %34 = tpu.concatenate %32, %28, %33 in 1 : vector<4x8xf32>, vector<4x49xf32>, vector<4x8xf32> -> vector<4x65xf32>
    %35 = vector.extract_strided_slice %34 {offsets = [0, 0], sizes = [4, 49], strides = [1, 1]} : vector<4x65xf32> to vector<4x49xf32>
    %36 = vector.extract_strided_slice %29 {offsets = [0, 0], sizes = [1, 49], strides = [1, 1]} : vector<9x49xf32> to vector<1x49xf32>
    %37 = vector.broadcast %36 : vector<1x49xf32> to vector<4x49xf32>
    %38 = arith.mulf %35, %37 : vector<4x49xf32>
    %c0_28 = arith.constant 0 : index
    %c0_29 = arith.constant 0 : index
    %39 = vector.load %arg7[%c0_28, %c0_29] : memref<37x49xf32, #tpu.memory_space<vmem>>, vector<4x49xf32>
    tpu.vector_store %arg7[%c0_28, %c0_29], %38 {strides = array<i32>} : memref<37x49xf32, #tpu.memory_space<vmem>>, vector<4x49xf32>,
    %40 = vector.extract_strided_slice %34 {offsets = [0, 1], sizes = [4, 49], strides = [1, 1]} : vector<4x65xf32> to vector<4x49xf32>
    %41 = vector.extract_strided_slice %29 {offsets = [1, 0], sizes = [1, 49], strides = [1, 1]} : vector<9x49xf32> to vector<1x49xf32>
    %42 = vector.broadcast %41 : vector<1x49xf32> to vector<4x49xf32>
    %43 = arith.mulf %40, %42 : vector<4x49xf32>
    %c4_30 = arith.constant 4 : index
    %c0_31 = arith.constant 0 : index
    %44 = vector.load %arg7[%c4_30, %c0_31] : memref<37x49xf32, #tpu.memory_space<vmem>>, vector<4x49xf32>
    tpu.vector_store %arg7[%c4_30, %c0_31], %43 {strides = array<i32>} : memref<37x49xf32, #tpu.memory_space<vmem>>, vector<4x49xf32>,
    %45 = vector.extract_strided_slice %34 {offsets = [0, 2], sizes = [4, 49], strides = [1, 1]} : vector<4x65xf32> to vector<4x49xf32>
    %46 = vector.extract_strided_slice %29 {offsets = [2, 0], sizes = [1, 49], strides = [1, 1]} : vector<9x49xf32> to vector<1x49xf32>
    %47 = vector.broadcast %46 : vector<1x49xf32> to vector<4x49xf32>
    %48 = arith.mulf %45, %47 : vector<4x49xf32>
    %c8_32 = arith.constant 8 : index
    %c0_33 = arith.constant 0 : index
    %49 = vector.load %arg7[%c8_32, %c0_33] : memref<37x49xf32, #tpu.memory_space<vmem>>, vector<4x49xf32>
    tpu.vector_store %arg7[%c8_32, %c0_33], %48 {strides = array<i32>} : memref<37x49xf32, #tpu.memory_space<vmem>>, vector<4x49xf32>,
    %50 = vector.extract_strided_slice %34 {offsets = [0, 7], sizes = [4, 49], strides = [1, 1]} : vector<4x65xf32> to vector<4x49xf32>
    %51 = vector.extract_strided_slice %29 {offsets = [3, 0], sizes = [1, 49], strides = [1, 1]} : vector<9x49xf32> to vector<1x49xf32>
    %52 = vector.broadcast %51 : vector<1x49xf32> to vector<4x49xf32>
    %53 = arith.mulf %50, %52 : vector<4x49xf32>
    %c12 = arith.constant 12 : index
    %c0_34 = arith.constant 0 : index
    %54 = vector.load %arg7[%c12, %c0_34] : memref<37x49xf32, #tpu.memory_space<vmem>>, vector<4x49xf32>
    tpu.vector_store %arg7[%c12, %c0_34], %53 {strides = array<i32>} : memref<37x49xf32, #tpu.memory_space<vmem>>, vector<4x49xf32>,
    %55 = vector.extract_strided_slice %34 {offsets = [0, 8], sizes = [4, 49], strides = [1, 1]} : vector<4x65xf32> to vector<4x49xf32>
    %56 = vector.extract_strided_slice %29 {offsets = [4, 0], sizes = [1, 49], strides = [1, 1]} : vector<9x49xf32> to vector<1x49xf32>
    %57 = vector.broadcast %56 : vector<1x49xf32> to vector<4x49xf32>
    %58 = arith.mulf %55, %57 : vector<4x49xf32>
    %c16 = arith.constant 16 : index
    %c0_35 = arith.constant 0 : index
    %59 = vector.load %arg7[%c16, %c0_35] : memref<37x49xf32, #tpu.memory_space<vmem>>, vector<4x49xf32>
    tpu.vector_store %arg7[%c16, %c0_35], %58 {strides = array<i32>} : memref<37x49xf32, #tpu.memory_space<vmem>>, vector<4x49xf32>,
    %60 = vector.extract_strided_slice %34 {offsets = [0, 9], sizes = [4, 49], strides = [1, 1]} : vector<4x65xf32> to vector<4x49xf32>
    %61 = vector.extract_strided_slice %29 {offsets = [5, 0], sizes = [1, 49], strides = [1, 1]} : vector<9x49xf32> to vector<1x49xf32>
    %62 = vector.broadcast %61 : vector<1x49xf32> to vector<4x49xf32>
    %63 = arith.mulf %60, %62 : vector<4x49xf32>
    %c20 = arith.constant 20 : index
    %c0_36 = arith.constant 0 : index
    %64 = vector.load %arg7[%c20, %c0_36] : memref<37x49xf32, #tpu.memory_space<vmem>>, vector<4x49xf32>
    tpu.vector_store %arg7[%c20, %c0_36], %63 {strides = array<i32>} : memref<37x49xf32, #tpu.memory_space<vmem>>, vector<4x49xf32>,
    %65 = vector.extract_strided_slice %34 {offsets = [0, 14], sizes = [4, 49], strides = [1, 1]} : vector<4x65xf32> to vector<4x49xf32>
    %66 = vector.extract_strided_slice %29 {offsets = [6, 0], sizes = [1, 49], strides = [1, 1]} : vector<9x49xf32> to vector<1x49xf32>
    %67 = vector.broadcast %66 : vector<1x49xf32> to vector<4x49xf32>
    %68 = arith.mulf %65, %67 : vector<4x49xf32>
    %c24 = arith.constant 24 : index
    %c0_37 = arith.constant 0 : index
    %69 = vector.load %arg7[%c24, %c0_37] : memref<37x49xf32, #tpu.memory_space<vmem>>, vector<4x49xf32>
    tpu.vector_store %arg7[%c24, %c0_37], %68 {strides = array<i32>} : memref<37x49xf32, #tpu.memory_space<vmem>>, vector<4x49xf32>,
    %70 = vector.extract_strided_slice %34 {offsets = [0, 15], sizes = [4, 49], strides = [1, 1]} : vector<4x65xf32> to vector<4x49xf32>
    %71 = vector.extract_strided_slice %29 {offsets = [7, 0], sizes = [1, 49], strides = [1, 1]} : vector<9x49xf32> to vector<1x49xf32>
    %72 = vector.broadcast %71 : vector<1x49xf32> to vector<4x49xf32>
    %73 = arith.mulf %70, %72 : vector<4x49xf32>
    %c28 = arith.constant 28 : index
    %c0_38 = arith.constant 0 : index
    %74 = vector.load %arg7[%c28, %c0_38] : memref<37x49xf32, #tpu.memory_space<vmem>>, vector<4x49xf32>
    tpu.vector_store %arg7[%c28, %c0_38], %73 {strides = array<i32>} : memref<37x49xf32, #tpu.memory_space<vmem>>, vector<4x49xf32>,
    %75 = vector.extract_strided_slice %34 {offsets = [0, 16], sizes = [4, 49], strides = [1, 1]} : vector<4x65xf32> to vector<4x49xf32>
    %76 = vector.extract_strided_slice %29 {offsets = [8, 0], sizes = [1, 49], strides = [1, 1]} : vector<9x49xf32> to vector<1x49xf32>
    %77 = vector.broadcast %76 : vector<1x49xf32> to vector<4x49xf32>
    %78 = arith.mulf %75, %77 : vector<4x49xf32>
    %c32 = arith.constant 32 : index
    %c0_39 = arith.constant 0 : index
    %79 = vector.load %arg7[%c32, %c0_39] : memref<37x49xf32, #tpu.memory_space<vmem>>, vector<4x49xf32>
    tpu.vector_store %arg7[%c32, %c0_39], %78 {strides = array<i32>} : memref<37x49xf32, #tpu.memory_space<vmem>>, vector<4x49xf32>,
    %c0_40 = arith.constant 0 : index
    %c0_41 = arith.constant 0 : index
    %c0_42 = arith.constant 0 : index
    %80 = vector.load %arg5[%c0_40, %c0_41, %c0_42] : memref<1x4x37xf32, #tpu.memory_space<vmem>>, vector<1x4x37xf32>
    %81 = vector.shape_cast %80 : vector<1x4x37xf32> to vector<4x37xf32>
    %c0_43 = arith.constant 0 : index
    %c0_44 = arith.constant 0 : index
    %82 = vector.load %arg7[%c0_43, %c0_44] : memref<37x49xf32, #tpu.memory_space<vmem>>, vector<37x49xf32>
    %cst_45 = arith.constant dense<0.000000e+00> : vector<4x49xf32>
    %83 = tpu.matmul %81, %82, %cst_45 {dimension_numbers = #tpu.dot_dimension_numbers<[1], [0], [0], [1], [0, 0, 1, 1], [], []>} : vector<4x37xf32>, vector<37x49xf32>, vector<4x49xf32> -> vector<4x49xf32>
    %cst_46 = arith.constant 0.000000e+00 : f32
    %84 = vector.broadcast %cst_46 : f32 to vector<4x49xf32>
    %85 = arith.maximumf %83, %84 : vector<4x49xf32>
    %c0_47 = arith.constant 0 : index
    %c0_48 = arith.constant 0 : index
    %c0_49 = arith.constant 0 : index
    %86 = vector.load %arg6[%c0_47, %c0_48, %c0_49] : memref<1x4x49xf32, #tpu.memory_space<vmem>>, vector<1x4x49xf32>
    %87 = vector.shape_cast %86 : vector<1x4x49xf32> to vector<4x49xf32>
    %88 = vector.shape_cast %85 : vector<4x49xf32> to vector<1x4x49xf32>
    tpu.vector_store %arg6[%c0_47, %c0_48, %c0_49], %88 {strides = array<i32>} : memref<1x4x49xf32, #tpu.memory_space<vmem>>, vector<1x4x49xf32>,
    return
  }
  func.func @transform_0(%arg0: i32) -> (i32, i32, i32) {
    %c0_i32 = arith.constant 0 : i32
    %c0_i32_0 = arith.constant 0 : i32
    %c0_i32_1 = arith.constant 0 : i32
    return %arg0, %c0_i32, %c0_i32_0 : i32, i32, i32
  }
  func.func @transform_1(%arg0: i32) -> (i32, i32) {
    %c0_i32 = arith.constant 0 : i32
    %c0_i32_0 = arith.constant 0 : i32
    %c0_i32_1 = arith.constant 0 : i32
    return %c0_i32, %c0_i32_0 : i32, i32
  }
  func.func @transform_2(%arg0: i32) -> (i32, i32) {
    %c0_i32 = arith.constant 0 : i32
    %c0_i32_0 = arith.constant 0 : i32
    %c0_i32_1 = arith.constant 0 : i32
    return %c0_i32, %c0_i32_0 : i32, i32
  }
  func.func @transform_3(%arg0: i32) -> (i32, i32) {
    %c0_i32 = arith.constant 0 : i32
    %c0_i32_0 = arith.constant 0 : i32
    %c0_i32_1 = arith.constant 0 : i32
    return %c0_i32, %c0_i32_0 : i32, i32
  }
  func.func @transform_4(%arg0: i32) -> (i32, i32, i32) {
    %c0_i32 = arith.constant 0 : i32
    %c0_i32_0 = arith.constant 0 : i32
    %c0_i32_1 = arith.constant 0 : i32
    %c0_i32_2 = arith.constant 0 : i32
    return %c0_i32, %c0_i32_0, %c0_i32_1 : i32, i32, i32
  }
  func.func @transform_5(%arg0: i32) -> (i32, i32, i32) {
    %c0_i32 = arith.constant 0 : i32
    %c0_i32_0 = arith.constant 0 : i32
    %c0_i32_1 = arith.constant 0 : i32
    return %arg0, %c0_i32, %c0_i32_0 : i32, i32, i32
  }
}

</mosaic_0001>

<llo_original>
// kernel: tpu_custom_call.1
$region0: #{tpu_custom_call.1}
  #allocation0 [shape = 'u32[]', space=smem, size = 0x4, offset = 0x4, fixed_abs, tag = 'smem constant byte address 0x4 - core index']
  #allocation1 [shape = 'u32[144,128]{1,0:T(1,128)}', space=vmem, size = 0x12000, scoped, tag = 'internal scratch']
  #allocation2 [shape = 'f32[37,49]{1,0:T(8,128)}', space=vmem, size = 0x5000, scoped, tag = 'scratch operand']
  %s0 = inlined_call_operand.vmem [shape: f32[2,1,256], index: 0, kind: input, shape index: {}]
  %s1 = inlined_call_operand.vmem [shape: f32[256,441], index: 1, kind: input, shape index: {}]
  %s2 = inlined_call_operand.vmem [shape: f32[9,49], index: 2, kind: input, shape index: {}]
  %s3 = inlined_call_operand.vmem [shape: f32[4,10], index: 3, kind: input, shape index: {}]
  %s4 = inlined_call_operand.vmem [shape: f32[1,4,37], index: 4, kind: input, shape index: {}]
  %s5 = inlined_call_operand.hbm [shape: f32[2,4,49], index: 5, kind: output, shape index: {}]
  %s6 = sld [smem:[#allocation0]]
  $region53: #{tpu_custom_call.1} parent=0
    _
  %s8 = ssub.s32 1, %s6
  %s9 = scalar_select 0, %s8, %s6
  $region1: #{tpu_custom_call.1} parent=0
    #allocation3 [shape = 'u8[4096]{0}', space=vmem, size = 0x1000, scoped, tag = 'output window, operand 0']
    #allocation4 [shape = 's32[2]{0}', space=sflag, size = 0x8, scoped, tag = 'scoped memory for tpu_custom_call.1']
    %10 = vsyncpa [#allocation4], 0
    %s11 = scalar_lea.sflag [#allocation4], 1
    %12 = vsyncpa %s11, 0
    loop: start=0, step=1, limit=4
    $region2: #{tpu_custom_call.1} parent=1 // loop_pre_header
      _
    $region3: #{tpu_custom_call.1} parent=1 // loop_header
      %s14 = sphi 0, %s18
      %p15 = scmp.ge.s32.totalorder %s14, 4
      %s24 = sphi 0, %s26
      %s27 = sphi 0, %s24
      %s28 = sphi 0, %s27
      %s44 = sphi 0, %s28
      %s48 = sphi 0, %s48
      %s50 = sphi 0, %s48
      %s51 = sphi 0, %s50
      %s65 = sphi 0, %s51
      %s69 = sphi 0, %s69
      %s71 = sphi 0, %s69
      %s72 = sphi 0, %s71
      %s86 = sphi 0, %s72
      %s90 = sphi 0, %s90
      %s92 = sphi 0, %s90
      %s93 = sphi 0, %s92
      %s107 = sphi 0, %s93
      %s111 = sphi 0, %s111
      %s113 = sphi 0, %s111
      %s114 = sphi 0, %s113
      %s128 = sphi 0, %s114
      %s134 = sphi 0, %s136
      %s137 = sphi 0, %s134
      %s138 = sphi 0, %s137
      %s154 = sphi 0, %s138
    $region4: #{tpu_custom_call.1} parent=1 // loop_header_branch
      %17 = sbr.rel (%p15) target = $region8
    $region5: #{tpu_custom_call.1} parent=1 // loop_body
      %s19 = ssub.s32 %s14, 1
      %s20 = ssub.s32 %s14, 2
      %s21 = sadd.s32 %s14, 1
      %s22 = ssub.s32 %s14, %s21
      %p23 = scmp.eq.s32.totalorder %s22, 0
      %s25 = sadd.s32 %s24, 1
      %s26 = scalar_select %p23, %s24, %s25
      %p29 = pneg %p23
      %p30 = scmp.eq.s32.totalorder %s14, 1
      %p31 = por %p29, %p30
      %p32 = scmp.ne.s32.totalorder %s24, %s27
      %p33 = scmp.eq.s32.totalorder %s14, 0
      %p34 = por %p32, %p33
      %p35 = scmp.ne.s32.totalorder %s24, %s27
      %p36 = scmp.eq.s32.totalorder %s19, 1
      %p37 = por %p35, %p36
      %p38 = scmp.ne.s32.totalorder %s27, %s28
      %p39 = scmp.eq.s32.totalorder %s19, 0
      %p40 = por %p38, %p39
      %p41 = scmp.ne.s32.totalorder %s27, %s28
      %p42 = scmp.eq.s32.totalorder %s20, 1
      %p43 = por %p41, %p42
      %p45 = scmp.ne.s32.totalorder %s28, %s44
      %p46 = scmp.eq.s32.totalorder %s20, 0
      %p47 = por %p45, %p46
      %s49 = sadd.s32 %s48, 1
      %p52 = scmp.eq.s32.totalorder %s14, 1
      %p53 = scmp.ne.s32.totalorder %s48, %s50
      %p54 = scmp.eq.s32.totalorder %s14, 0
      %p55 = por %p53, %p54
      %p56 = scmp.ne.s32.totalorder %s48, %s50
      %p57 = scmp.eq.s32.totalorder %s19, 1
      %p58 = por %p56, %p57
      %p59 = scmp.ne.s32.totalorder %s50, %s51
      %p60 = scmp.eq.s32.totalorder %s19, 0
      %p61 = por %p59, %p60
      %p62 = scmp.ne.s32.totalorder %s50, %s51
      %p63 = scmp.eq.s32.totalorder %s20, 1
      %p64 = por %p62, %p63
      %p66 = scmp.ne.s32.totalorder %s51, %s65
      %p67 = scmp.eq.s32.totalorder %s20, 0
      %p68 = por %p66, %p67
      %s70 = sadd.s32 %s69, 1
      %p73 = scmp.eq.s32.totalorder %s14, 1
      %p74 = scmp.ne.s32.totalorder %s69, %s71
      %p75 = scmp.eq.s32.totalorder %s14, 0
      %p76 = por %p74, %p75
      %p77 = scmp.ne.s32.totalorder %s69, %s71
      %p78 = scmp.eq.s32.totalorder %s19, 1
      %p79 = por %p77, %p78
      %p80 = scmp.ne.s32.totalorder %s71, %s72
      %p81 = scmp.eq.s32.totalorder %s19, 0
      %p82 = por %p80, %p81
      %p83 = scmp.ne.s32.totalorder %s71, %s72
      %p84 = scmp.eq.s32.totalorder %s20, 1
      %p85 = por %p83, %p84
      %p87 = scmp.ne.s32.totalorder %s72, %s86
      %p88 = scmp.eq.s32.totalorder %s20, 0
      %p89 = por %p87, %p88
      %s91 = sadd.s32 %s90, 1
      %p94 = scmp.eq.s32.totalorder %s14, 1
      %p95 = scmp.ne.s32.totalorder %s90, %s92
      %p96 = scmp.eq.s32.totalorder %s14, 0
      %p97 = por %p95, %p96
      %p98 = scmp.ne.s32.totalorder %s90, %s92
      %p99 = scmp.eq.s32.totalorder %s19, 1
      %p100 = por %p98, %p99
      %p101 = scmp.ne.s32.totalorder %s92, %s93
      %p102 = scmp.eq.s32.totalorder %s19, 0
      %p103 = por %p101, %p102
      %p104 = scmp.ne.s32.totalorder %s92, %s93
      %p105 = scmp.eq.s32.totalorder %s20, 1
      %p106 = por %p104, %p105
      %p108 = scmp.ne.s32.totalorder %s93, %s107
      %p109 = scmp.eq.s32.totalorder %s20, 0
      %p110 = por %p108, %p109
      %s112 = sadd.s32 %s111, 1
      %p115 = scmp.eq.s32.totalorder %s14, 1
      %p116 = scmp.ne.s32.totalorder %s111, %s113
      %p117 = scmp.eq.s32.totalorder %s14, 0
      %p118 = por %p116, %p117
      %p119 = scmp.ne.s32.totalorder %s111, %s113
      %p120 = scmp.eq.s32.totalorder %s19, 1
      %p121 = por %p119, %p120
      %p122 = scmp.ne.s32.totalorder %s113, %s114
      %p123 = scmp.eq.s32.totalorder %s19, 0
      %p124 = por %p122, %p123
      %p125 = scmp.ne.s32.totalorder %s113, %s114
      %p126 = scmp.eq.s32.totalorder %s20, 1
      %p127 = por %p125, %p126
      %p129 = scmp.ne.s32.totalorder %s114, %s128
      %p130 = scmp.eq.s32.totalorder %s20, 0
      %p131 = por %p129, %p130
      %s132 = ssub.s32 %s14, %s21
      %p133 = scmp.eq.s32.totalorder %s132, 0
      %s135 = sadd.s32 %s134, 1
      %s136 = scalar_select %p133, %s134, %s135
      %p139 = pneg %p133
      %p140 = scmp.eq.s32.totalorder %s14, 1
      %p141 = por %p139, %p140
      %p142 = scmp.ne.s32.totalorder %s134, %s137
      %p143 = scmp.eq.s32.totalorder %s14, 0
      %p144 = por %p142, %p143
      %p145 = scmp.ne.s32.totalorder %s134, %s137
      %p146 = scmp.eq.s32.totalorder %s19, 1
      %p147 = por %p145, %p146
      %p148 = scmp.ne.s32.totalorder %s137, %s138
      %p149 = scmp.eq.s32.totalorder %s19, 0
      %p150 = por %p148, %p149
      %p151 = scmp.ne.s32.totalorder %s137, %s138
      %p152 = scmp.eq.s32.totalorder %s20, 1
      %p153 = por %p151, %p152
      %p155 = scmp.ne.s32.totalorder %s138, %s154
      %p156 = scmp.eq.s32.totalorder %s20, 0
      %p157 = por %p155, %p156
      %p158 = scmp.le.s32.totalorder 1, %s14
      %p159 = scmp.lt.s32.totalorder %s14, 3
      %p160 = pnand %p158, %p159
      %p161 = pneg %p160
      // Predicated region
      $region9: #{tpu_custom_call.1} parent=5 // pred_check
        _
      $region10: #{tpu_custom_call.1} parent=5 // pred_check_branch
        %163 = sbr.rel (%p160) target = $region12
      $region11: #{tpu_custom_call.1} parent=5 // pred_region
        %s164 = ssub.s32 %s14, 1
        // Predicated region
        $region13: #{tpu_custom_call.1} parent=11 // pred_check
          %p165 = pneg %p61
        $region14: #{tpu_custom_call.1} parent=11 // pred_check_branch
          %167 = sbr.rel (%p165) target = $region16
        $region15: #{tpu_custom_call.1} parent=11 // pred_region
          _
        $region16: #{tpu_custom_call.1} parent=11 // pred_fallthru
          _
        // Predicated region
        $region17: #{tpu_custom_call.1} parent=11 // pred_check
          %p168 = pneg %p82
        $region18: #{tpu_custom_call.1} parent=11 // pred_check_branch
          %170 = sbr.rel (%p168) target = $region20
        $region19: #{tpu_custom_call.1} parent=11 // pred_region
          _
        $region20: #{tpu_custom_call.1} parent=11 // pred_fallthru
          _
        // Predicated region
        $region21: #{tpu_custom_call.1} parent=11 // pred_check
          %p171 = pneg %p103
        $region22: #{tpu_custom_call.1} parent=11 // pred_check_branch
          %173 = sbr.rel (%p171) target = $region24
        $region23: #{tpu_custom_call.1} parent=11 // pred_region
          _
        $region24: #{tpu_custom_call.1} parent=11 // pred_fallthru
          _
        // Predicated region
        $region25: #{tpu_custom_call.1} parent=11 // pred_check
          %p174 = pneg %p124
        $region26: #{tpu_custom_call.1} parent=11 // pred_check_branch
          %176 = sbr.rel (%p174) target = $region28
        $region27: #{tpu_custom_call.1} parent=11 // pred_region
          _
        $region28: #{tpu_custom_call.1} parent=11 // pred_fallthru
          _
      $region12: #{tpu_custom_call.1} parent=5 // pred_fallthru
        _
      %p177 = scmp.lt.s32.totalorder %s14, 2
      // Predicated region
      $region29: #{tpu_custom_call.1} parent=5 // pred_check
        %p178 = pneg %p177
      $region30: #{tpu_custom_call.1} parent=5 // pred_check_branch
        %180 = sbr.rel (%p178) target = $region32
      $region31: #{tpu_custom_call.1} parent=5 // pred_region
        // Predicated region
        $region33: #{tpu_custom_call.1} parent=31 // pred_check
          %p181 = pneg %p34
        $region34: #{tpu_custom_call.1} parent=31 // pred_check_branch
          %183 = sbr.rel (%p181) target = $region36
        $region35: #{tpu_custom_call.1} parent=31 // pred_region
          %p184 = scmp.lt.s32.totalorder %s14, 1
          %s185 = scalar_select %p184, %s14, 1
          %s186 = smul.addr %s185, 2
          %s187 = scalar_lea.vmem %s0, %s186
        $region36: #{tpu_custom_call.1} parent=31 // pred_fallthru
          _
      $region32: #{tpu_custom_call.1} parent=5 // pred_fallthru
        _
      %p188 = scmp.le.s32.totalorder 1, %s14
      %p189 = scmp.lt.s32.totalorder %s14, 3
      %p190 = pnand %p188, %p189
      %p191 = pneg %p190
      // Predicated region
      $region37: #{tpu_custom_call.1} parent=5 // pred_check
        _
      $region38: #{tpu_custom_call.1} parent=5 // pred_check_branch
        %193 = sbr.rel (%p190) target = $region40
      $region39: #{tpu_custom_call.1} parent=5 // pred_region
        %s194 = ssub.s32 %s14, 1
        %p195 = scmp.lt.s32.totalorder %s19, 1
        %s196 = scalar_select %p195, %s19, 1
        %s197 = smul.addr %s196, 2
        %s198 = scalar_lea.vmem %s0, %s197
        %p199 = pneg %p40
        %p200 = pneg %p37
        %p201 = pneg %p61
        %p202 = pneg %p58
        %p203 = pneg %p82
        %p204 = pneg %p79
        %p205 = pneg %p103
        %p206 = pneg %p100
        %p207 = pneg %p124
        %p208 = pneg %p121
        %p209 = pneg %p150
        %p210 = pneg %p147
        %s211 = sand.u32 %s137, 1
        %s212 = scalar_lea.sflag [#allocation4], %s211
        %s213 = sand.u32 %s137, 1
        %s214 = smul.addr %s213, 4
        %s215 = scalar_lea.vmem [#allocation3], %s214
        %p216 = scmp.lt.s32.totalorder %s19, 1
        %s217 = scalar_select %p216, %s19, 1
        %s218 = smul.addr %s217, 2
        %s219 = scalar_lea.vmem %s0, %s218
        %v220 = vld [vmem:[%s219] sm:$0x3]
        %v221 = vld [vmem:[%s1] sm:$0xff]
        %v222 = vld [vmem:[%s1 + $0x8] sm:$0xff]
        %v223 = vld [vmem:[%s1 + $0x10] sm:$0xff]
        %v224 = vld [vmem:[%s1 + $0x18] sm:$0xff]
        %v225 = vld [vmem:[%s1 + $0x20] sm:$0xff]
        %v226 = vld [vmem:[%s1 + $0x28] sm:$0xff]
        %v227 = vld [vmem:[%s1 + $0x30] sm:$0xff]
        %v228 = vld [vmem:[%s1 + $0x38] sm:$0xff]
        %v229 = vld [vmem:[%s1 + $0x40] sm:$0xff]
        %v230 = vld [vmem:[%s1 + $0x48] sm:$0xff]
        %v231 = vld [vmem:[%s1 + $0x50] sm:$0xff]
        %v232 = vld [vmem:[%s1 + $0x58] sm:$0xff]
        %v233 = vld [vmem:[%s1 + $0x60] sm:$0xff]
        %v234 = vld [vmem:[%s1 + $0x68] sm:$0xff]
        %v235 = vld [vmem:[%s1 + $0x70] sm:$0xff]
        %v236 = vld [vmem:[%s1 + $0x78] sm:$0xff]
        %v237 = vld [vmem:[%s1 + $0x80] sm:$0xff]
        %v238 = vld [vmem:[%s1 + $0x88] sm:$0xff]
        %v239 = vld [vmem:[%s1 + $0x90] sm:$0xff]
        %v240 = vld [vmem:[%s1 + $0x98] sm:$0xff]
        %v241 = vld [vmem:[%s1 + $0xa0] sm:$0xff]
        %v242 = vld [vmem:[%s1 + $0xa8] sm:$0xff]
        %v243 = vld [vmem:[%s1 + $0xb0] sm:$0xff]
        %v244 = vld [vmem:[%s1 + $0xb8] sm:$0xff]
        %v245 = vld [vmem:[%s1 + $0xc0] sm:$0xff]
        %v246 = vld [vmem:[%s1 + $0xc8] sm:$0xff]
        %v247 = vld [vmem:[%s1 + $0xd0] sm:$0xff]
        %v248 = vld [vmem:[%s1 + $0xd8] sm:$0xff]
        %v249 = vld [vmem:[%s1 + $0xe0] sm:$0xff]
        %v250 = vld [vmem:[%s1 + $0xe8] sm:$0xff]
        %v251 = vld [vmem:[%s1 + $0xf0] sm:$0xff]
        %v252 = vld [vmem:[%s1 + $0xf8] sm:$0xff]
        %v253 = vld [vmem:[%s1 + $0x100] sm:$0xff]
        %v254 = vld [vmem:[%s1 + $0x108] sm:$0xff]
        %v255 = vld [vmem:[%s1 + $0x110] sm:$0xff]
        %v256 = vld [vmem:[%s1 + $0x118] sm:$0xff]
        %v257 = vld [vmem:[%s1 + $0x120] sm:$0xff]
        %v258 = vld [vmem:[%s1 + $0x128] sm:$0xff]
        %v259 = vld [vmem:[%s1 + $0x130] sm:$0xff]
        %v260 = vld [vmem:[%s1 + $0x138] sm:$0xff]
        %v261 = vld [vmem:[%s1 + $0x140] sm:$0xff]
        %v262 = vld [vmem:[%s1 + $0x148] sm:$0xff]
        %v263 = vld [vmem:[%s1 + $0x150] sm:$0xff]
        %v264 = vld [vmem:[%s1 + $0x158] sm:$0xff]
        %v265 = vld [vmem:[%s1 + $0x160] sm:$0xff]
        %v266 = vld [vmem:[%s1 + $0x168] sm:$0xff]
        %v267 = vld [vmem:[%s1 + $0x170] sm:$0xff]
        %v268 = vld [vmem:[%s1 + $0x178] sm:$0xff]
        %v269 = vld [vmem:[%s1 + $0x180] sm:$0xff]
        %v270 = vld [vmem:[%s1 + $0x188] sm:$0xff]
        %v271 = vld [vmem:[%s1 + $0x190] sm:$0xff]
        %v272 = vld [vmem:[%s1 + $0x198] sm:$0xff]
        %v273 = vld [vmem:[%s1 + $0x1a0] sm:$0xff]
        %v274 = vld [vmem:[%s1 + $0x1a8] sm:$0xff]
        %v275 = vld [vmem:[%s1 + $0x1b0] sm:$0xff]
        %v276 = vld [vmem:[%s1 + $0x1b8] sm:$0xff]
        %v277 = vld [vmem:[%s1 + $0x1c0] sm:$0xff]
        %v278 = vld [vmem:[%s1 + $0x1c8] sm:$0xff]
        %v279 = vld [vmem:[%s1 + $0x1d0] sm:$0xff]
        %v280 = vld [vmem:[%s1 + $0x1d8] sm:$0xff]
        %v281 = vld [vmem:[%s1 + $0x1e0] sm:$0xff]
        %v282 = vld [vmem:[%s1 + $0x1e8] sm:$0xff]
        %v283 = vld [vmem:[%s1 + $0x1f0] sm:$0xff]
        %v284 = vld [vmem:[%s1 + $0x1f8] sm:$0xff]
        %v285 = vld [vmem:[%s1 + $0x200] sm:$0xff]
        %v286 = vld [vmem:[%s1 + $0x208] sm:$0xff]
        %v287 = vld [vmem:[%s1 + $0x210] sm:$0xff]
        %v288 = vld [vmem:[%s1 + $0x218] sm:$0xff]
        %v289 = vld [vmem:[%s1 + $0x220] sm:$0xff]
        %v290 = vld [vmem:[%s1 + $0x228] sm:$0xff]
        %v291 = vld [vmem:[%s1 + $0x230] sm:$0xff]
        %v292 = vld [vmem:[%s1 + $0x238] sm:$0xff]
        %v293 = vld [vmem:[%s1 + $0x240] sm:$0xff]
        %v294 = vld [vmem:[%s1 + $0x248] sm:$0xff]
        %v295 = vld [vmem:[%s1 + $0x250] sm:$0xff]
        %v296 = vld [vmem:[%s1 + $0x258] sm:$0xff]
        %v297 = vld [vmem:[%s1 + $0x260] sm:$0xff]
        %v298 = vld [vmem:[%s1 + $0x268] sm:$0xff]
        %v299 = vld [vmem:[%s1 + $0x270] sm:$0xff]
        %v300 = vld [vmem:[%s1 + $0x278] sm:$0xff]
        %v301 = vld [vmem:[%s1 + $0x280] sm:$0xff]
        %v302 = vld [vmem:[%s1 + $0x288] sm:$0xff]
        %v303 = vld [vmem:[%s1 + $0x290] sm:$0xff]
        %v304 = vld [vmem:[%s1 + $0x298] sm:$0xff]
        %v305 = vld [vmem:[%s1 + $0x2a0] sm:$0xff]
        %v306 = vld [vmem:[%s1 + $0x2a8] sm:$0xff]
        %v307 = vld [vmem:[%s1 + $0x2b0] sm:$0xff]
        %v308 = vld [vmem:[%s1 + $0x2b8] sm:$0xff]
        %v309 = vld [vmem:[%s1 + $0x2c0] sm:$0xff]
        %v310 = vld [vmem:[%s1 + $0x2c8] sm:$0xff]
        %v311 = vld [vmem:[%s1 + $0x2d0] sm:$0xff]
        %v312 = vld [vmem:[%s1 + $0x2d8] sm:$0xff]
        %v313 = vld [vmem:[%s1 + $0x2e0] sm:$0xff]
        %v314 = vld [vmem:[%s1 + $0x2e8] sm:$0xff]
        %v315 = vld [vmem:[%s1 + $0x2f0] sm:$0xff]
        %v316 = vld [vmem:[%s1 + $0x2f8] sm:$0xff]
        %v317 = vld [vmem:[%s1 + $0x300] sm:$0xff]
        %v318 = vld [vmem:[%s1 + $0x308] sm:$0xff]
        %v319 = vld [vmem:[%s1 + $0x310] sm:$0xff]
        %v320 = vld [vmem:[%s1 + $0x318] sm:$0xff]
        %v321 = vld [vmem:[%s1 + $0x320] sm:$0xff]
        %v322 = vld [vmem:[%s1 + $0x328] sm:$0xff]
        %v323 = vld [vmem:[%s1 + $0x330] sm:$0xff]
        %v324 = vld [vmem:[%s1 + $0x338] sm:$0xff]
        %v325 = vld [vmem:[%s1 + $0x340] sm:$0xff]
        %v326 = vld [vmem:[%s1 + $0x348] sm:$0xff]
        %v327 = vld [vmem:[%s1 + $0x350] sm:$0xff]
        %v328 = vld [vmem:[%s1 + $0x358] sm:$0xff]
        %v329 = vld [vmem:[%s1 + $0x360] sm:$0xff]
        %v330 = vld [vmem:[%s1 + $0x368] sm:$0xff]
        %v331 = vld [vmem:[%s1 + $0x370] sm:$0xff]
        %v332 = vld [vmem:[%s1 + $0x378] sm:$0xff]
        %v333 = vld [vmem:[%s1 + $0x380] sm:$0xff]
        %v334 = vld [vmem:[%s1 + $0x388] sm:$0xff]
        %v335 = vld [vmem:[%s1 + $0x390] sm:$0xff]
        %v336 = vld [vmem:[%s1 + $0x398] sm:$0xff]
        %v337 = vld [vmem:[%s1 + $0x3a0] sm:$0xff]
        %v338 = vld [vmem:[%s1 + $0x3a8] sm:$0xff]
        %v339 = vld [vmem:[%s1 + $0x3b0] sm:$0xff]
        %v340 = vld [vmem:[%s1 + $0x3b8] sm:$0xff]
        %v341 = vld [vmem:[%s1 + $0x3c0] sm:$0xff]
        %v342 = vld [vmem:[%s1 + $0x3c8] sm:$0xff]
        %v343 = vld [vmem:[%s1 + $0x3d0] sm:$0xff]
        %v344 = vld [vmem:[%s1 + $0x3d8] sm:$0xff]
        %v345 = vld [vmem:[%s1 + $0x3e0] sm:$0xff]
        %v346 = vld [vmem:[%s1 + $0x3e8] sm:$0xff]
        %v347 = vld [vmem:[%s1 + $0x3f0] sm:$0xff]
        %v348 = vld [vmem:[%s1 + $0x3f8] sm:$0xff]
        %v350 = vlaneseq
        %v351 = vshrl.u32 %v350, 7
        %v352 = vsub.s32 0, %v351
        %v353 = vrot.slane %v220, %v352
        %v354 = vlaneseq
        %v355 = vshrl.u32 %v354, 7
        %v356 = vsub.s32 1, %v355
        %v357 = vrot.slane %v220, %v356
        %360 = vmatprep.subr.mxu0 %v222
        %361 = vmatpush1.msra.mxu0 %v221
        %362 = vmatprep.subr.mxu0 %v226
        %363 = vmatpush1.msra.mxu0 %v225
        %364 = vmatprep.subr.mxu0 %v230
        %365 = vmatpush1.msra.mxu0 %v229
        %366 = vmatprep.subr.mxu0 %v234
        %367 = vmatpush1.msra.mxu0 %v233
        %368 = vmatprep.subr.mxu0 %v238
        %369 = vmatpush1.msra.mxu0 %v237
        %370 = vmatprep.subr.mxu0 %v242
        %371 = vmatpush1.msra.mxu0 %v241
        %372 = vmatprep.subr.mxu0 %v246
        %373 = vmatpush1.msra.mxu0 %v245
        %374 = vmatprep.subr.mxu0 %v250
        %375 = vmatpush1.msra.mxu0 %v249
        %376 = vmatprep.subr.mxu0 %v254
        %377 = vmatpush1.msra.mxu0 %v253
        %378 = vmatprep.subr.mxu0 %v258
        %379 = vmatpush1.msra.mxu0 %v257
        %380 = vmatprep.subr.mxu0 %v262
        %381 = vmatpush1.msra.mxu0 %v261
        %382 = vmatprep.subr.mxu0 %v266
        %383 = vmatpush1.msra.mxu0 %v265
        %384 = vmatprep.subr.mxu0 %v270
        %385 = vmatpush1.msra.mxu0 %v269
        %386 = vmatprep.subr.mxu0 %v274
        %387 = vmatpush1.msra.mxu0 %v273
        %388 = vmatprep.subr.mxu0 %v278
        %389 = vmatpush1.msra.mxu0 %v277
        %390 = vmatprep.subr.mxu0 %v282
        %391 = vmatpush1.msra.mxu0 %v281
        %392 = vmatprep.subr.mxu0 %v286
        %393 = vmatpush1.msra.mxu0 %v285
        %394 = vmatprep.subr.mxu0 %v290
        %395 = vmatpush1.msra.mxu0 %v289
        %396 = vmatprep.subr.mxu0 %v294
        %397 = vmatpush1.msra.mxu0 %v293
        %398 = vmatprep.subr.mxu0 %v298
        %399 = vmatpush1.msra.mxu0 %v297
        %400 = vmatprep.subr.mxu0 %v302
        %401 = vmatpush1.msra.mxu0 %v301
        %402 = vmatprep.subr.mxu0 %v306
        %403 = vmatpush1.msra.mxu0 %v305
        %404 = vmatprep.subr.mxu0 %v310
        %405 = vmatpush1.msra.mxu0 %v309
        %406 = vmatprep.subr.mxu0 %v314
        %407 = vmatpush1.msra.mxu0 %v313
        %408 = vmatprep.subr.mxu0 %v318
        %409 = vmatpush1.msra.mxu0 %v317
        %410 = vmatprep.subr.mxu0 %v322
        %411 = vmatpush1.msra.mxu0 %v321
        %412 = vmatprep.subr.mxu0 %v326
        %413 = vmatpush1.msra.mxu0 %v325
        %414 = vmatprep.subr.mxu0 %v330
        %415 = vmatpush1.msra.mxu0 %v329
        %416 = vmatprep.subr.mxu0 %v334
        %417 = vmatpush1.msra.mxu0 %v333
        %418 = vmatprep.subr.mxu0 %v338
        %419 = vmatpush1.msra.mxu0 %v337
        %420 = vmatprep.subr.mxu0 %v342
        %421 = vmatpush1.msra.mxu0 %v341
        %422 = vmatprep.subr.mxu0 %v346
        %423 = vmatpush1.msra.mxu0 %v345
        %424 = vmatprep.mubr.f32.mxu0 %v357
        %425 = vmatmul.mubr.f32.gmra.mrb[0].mxu0 %v353
        %v426 = vpop.f32.mrb[0].mxu0
        %v427 = vadd.f32 0.0, %v426
        %v428 = vpop.f32.mrb[0].mxu0
        %v429 = vadd.f32 0.0, %v428
        %430 = vdwg.mxu0
        %431 = vmatprep.subr.mxu0 %v224
        %432 = vmatpush1.msra.mxu0 %v223
        %433 = vmatprep.subr.mxu0 %v228
        %434 = vmatpush1.msra.mxu0 %v227
        %435 = vmatprep.subr.mxu0 %v232
        %436 = vmatpush1.msra.mxu0 %v231
        %437 = vmatprep.subr.mxu0 %v236
        %438 = vmatpush1.msra.mxu0 %v235
        %439 = vmatprep.subr.mxu0 %v240
        %440 = vmatpush1.msra.mxu0 %v239
        %441 = vmatprep.subr.mxu0 %v244
        %442 = vmatpush1.msra.mxu0 %v243
        %443 = vmatprep.subr.mxu0 %v248
        %444 = vmatpush1.msra.mxu0 %v247
        %445 = vmatprep.subr.mxu0 %v252
        %446 = vmatpush1.msra.mxu0 %v251
        %447 = vmatprep.subr.mxu0 %v256
        %448 = vmatpush1.msra.mxu0 %v255
        %449 = vmatprep.subr.mxu0 %v260
        %450 = vmatpush1.msra.mxu0 %v259
        %451 = vmatprep.subr.mxu0 %v264
        %452 = vmatpush1.msra.mxu0 %v263
        %453 = vmatprep.subr.mxu0 %v268
        %454 = vmatpush1.msra.mxu0 %v267
        %455 = vmatprep.subr.mxu0 %v272
        %456 = vmatpush1.msra.mxu0 %v271
        %457 = vmatprep.subr.mxu0 %v276
        %458 = vmatpush1.msra.mxu0 %v275
        %459 = vmatprep.subr.mxu0 %v280
        %460 = vmatpush1.msra.mxu0 %v279
        %461 = vmatprep.subr.mxu0 %v284
        %462 = vmatpush1.msra.mxu0 %v283
        %463 = vmatprep.subr.mxu0 %v288
        %464 = vmatpush1.msra.mxu0 %v287
        %465 = vmatprep.subr.mxu0 %v292
        %466 = vmatpush1.msra.mxu0 %v291
        %467 = vmatprep.subr.mxu0 %v296
        %468 = vmatpush1.msra.mxu0 %v295
        %469 = vmatprep.subr.mxu0 %v300
        %470 = vmatpush1.msra.mxu0 %v299
        %471 = vmatprep.subr.mxu0 %v304
        %472 = vmatpush1.msra.mxu0 %v303
        %473 = vmatprep.subr.mxu0 %v308
        %474 = vmatpush1.msra.mxu0 %v307
        %475 = vmatprep.subr.mxu0 %v312
        %476 = vmatpush1.msra.mxu0 %v311
        %477 = vmatprep.subr.mxu0 %v316
        %478 = vmatpush1.msra.mxu0 %v315
        %479 = vmatprep.subr.mxu0 %v320
        %480 = vmatpush1.msra.mxu0 %v319
        %481 = vmatprep.subr.mxu0 %v324
        %482 = vmatpush1.msra.mxu0 %v323
        %483 = vmatprep.subr.mxu0 %v328
        %484 = vmatpush1.msra.mxu0 %v327
        %485 = vmatprep.subr.mxu0 %v332
        %486 = vmatpush1.msra.mxu0 %v331
        %487 = vmatprep.subr.mxu0 %v336
        %488 = vmatpush1.msra.mxu0 %v335
        %489 = vmatprep.subr.mxu0 %v340
        %490 = vmatpush1.msra.mxu0 %v339
        %491 = vmatprep.subr.mxu0 %v344
        %492 = vmatpush1.msra.mxu0 %v343
        %493 = vmatprep.subr.mxu0 %v348
        %494 = vmatpush1.msra.mxu0 %v347
        %495 = vmatprep.mubr.f32.mxu0 %v357
        %496 = vmatmul.mubr.f32.gmra.mrb[0].mxu0 %v353
        %v497 = vpop.f32.mrb[0].mxu0
        %v498 = vadd.f32 0.0, %v497
        %v499 = vpop.f32.mrb[0].mxu0
        %v500 = vadd.f32 0.0, %v499
        %501 = vdwg.mxu0
        %vm502 = vcmask 393216
        %503 = vst.msk [vmem:[#allocation2] sm:$0x1] %vm502, %v427
        %505 = vrot.lane.b32.xlu0 %v427, 79
        %v506 = vpop.permute.xlu0 %505
        %508 = vst.msk [vmem:[#allocation2 + $0x1] sm:$0x1] %vm502, %v506
        %510 = vrot.lane.b32.xlu0 %v427, 30
        %v511 = vpop.permute.xlu0 %510
        %512 = vrot.lane.b32.xlu0 %v429, 30
        %v513 = vpop.permute.xlu0 %512
        %vm514 = vcmask 244736
        %v515 = vsel %vm514, %v511, %v513
        %517 = vst.msk [vmem:[#allocation2 + $0x2] sm:$0x1] %vm502, %v515
        %518 = vrot.lane.b32.xlu0 %v429, 109
        %v519 = vpop.permute.xlu0 %518
        %521 = vst.msk [vmem:[#allocation2 + $0x3] sm:$0x1] %vm502, %v519
        %522 = vrot.lane.b32.xlu0 %v429, 60
        %v523 = vpop.permute.xlu0 %522
        %525 = vst.msk [vmem:[#allocation2 + $0x4] sm:$0x1] %vm502, %v523
        %527 = vrot.lane.b32.xlu0 %v429, 11
        %v528 = vpop.permute.xlu0 %527
        %529 = vrot.lane.b32.xlu0 %v498, 11
        %v530 = vpop.permute.xlu0 %529
        %vm531 = vcmask 89088
        %v532 = vsel %vm531, %v528, %v530
        %534 = vst.msk [vmem:[#allocation2 + $0x5] sm:$0x1] %vm502, %v532
        %535 = vrot.lane.b32.xlu0 %v498, 90
        %v536 = vpop.permute.xlu0 %535
        %538 = vst.msk [vmem:[#allocation2 + $0x6] sm:$0x1] %vm502, %v536
        %540 = vrot.lane.b32.xlu0 %v498, 41
        %v541 = vpop.permute.xlu0 %540
        %542 = vrot.lane.b32.xlu0 %v500, 41
        %v543 = vpop.permute.xlu0 %542
        %vm544 = vcmask 334848
        %v545 = vsel %vm544, %v541, %v543
        %547 = vst.msk [vmem:[#allocation2 + $0x7] sm:$0x1] %vm502, %v545
        %548 = vrot.lane.b32.xlu0 %v500, 120
        %v549 = vpop.permute.xlu0 %548
        %551 = vst.msk [vmem:[#allocation2 + $0x8] sm:$0x1] %vm502, %v549
        %552 = vst.msk [vmem:[#allocation2 + $0x9] sm:$0x1] %vm502, 1.0
        %v553 = vld [vmem:[%s3] sm:$0xf]
        %v554 = vld [vmem:[#allocation2] sm:$0xff]
        %v555 = vld [vmem:[#allocation2 + $0x8] sm:$0x3]
        %vm556 = vcmask 80896
        %v558 = vsel %vm556, %v553, 0
        %vm560 = vcmask 1041408
        %v562 = vsel %vm560, %v555, 0
        %564 = vmatprep.subr.mxu0 0.0
        %565 = vmatpush1.msra.mxu0 %v554
        %566 = vmatprep.subr.mxu0 0.0
        %567 = vmatpush1.msra.mxu0 %v562
        %568 = vmatprep.subr.mxu0 0.0
        %569 = vmatpush1.msra.mxu0 0.0
        %570 = vmatprep.subr.mxu0 0.0
        %571 = vmatpush1.msra.mxu0 0.0
        %572 = vmatprep.subr.mxu0 0.0
        %573 = vmatpush1.msra.mxu0 0.0
        %574 = vmatprep.subr.mxu0 0.0
        %575 = vmatpush1.msra.mxu0 0.0
        %576 = vmatprep.subr.mxu0 0.0
        %577 = vmatpush1.msra.mxu0 0.0
        %578 = vmatprep.subr.mxu0 0.0
        %579 = vmatpush1.msra.mxu0 0.0
        %580 = vmatprep.subr.mxu0 0.0
        %581 = vmatpush1.msra.mxu0 0.0
        %582 = vmatprep.subr.mxu0 0.0
        %583 = vmatpush1.msra.mxu0 0.0
        %584 = vmatprep.subr.mxu0 0.0
        %585 = vmatpush1.msra.mxu0 0.0
        %586 = vmatprep.subr.mxu0 0.0
        %587 = vmatpush1.msra.mxu0 0.0
        %588 = vmatprep.subr.mxu0 0.0
        %589 = vmatpush1.msra.mxu0 0.0
        %590 = vmatprep.subr.mxu0 0.0
        %591 = vmatpush1.msra.mxu0 0.0
        %592 = vmatprep.subr.mxu0 0.0
        %593 = vmatpush1.msra.mxu0 0.0
        %594 = vmatprep.subr.mxu0 0.0
        %595 = vmatpush1.msra.mxu0 0.0
        %596 = vmatprep.subr.mxu0 0.0
        %597 = vmatpush1.msra.mxu0 0.0
        %598 = vmatprep.subr.mxu0 0.0
        %599 = vmatpush1.msra.mxu0 0.0
        %600 = vmatprep.subr.mxu0 0.0
        %601 = vmatpush1.msra.mxu0 0.0
        %602 = vmatprep.subr.mxu0 0.0
        %603 = vmatpush1.msra.mxu0 0.0
        %604 = vmatprep.subr.mxu0 0.0
        %605 = vmatpush1.msra.mxu0 0.0
        %606 = vmatprep.subr.mxu0 0.0
        %607 = vmatpush1.msra.mxu0 0.0
        %608 = vmatprep.subr.mxu0 0.0
        %609 = vmatpush1.msra.mxu0 0.0
        %610 = vmatprep.subr.mxu0 0.0
        %611 = vmatpush1.msra.mxu0 0.0
        %612 = vmatprep.subr.mxu0 0.0
        %613 = vmatpush1.msra.mxu0 0.0
        %614 = vmatprep.subr.mxu0 0.0
        %615 = vmatpush1.msra.mxu0 0.0
        %616 = vmatprep.subr.mxu0 0.0
        %617 = vmatpush1.msra.mxu0 0.0
        %618 = vmatprep.subr.mxu0 0.0
        %619 = vmatpush1.msra.mxu0 0.0
        %620 = vmatprep.subr.mxu0 0.0
        %621 = vmatpush1.msra.mxu0 0.0
        %622 = vmatprep.subr.mxu0 0.0
        %623 = vmatpush1.msra.mxu0 0.0
        %624 = vmatprep.subr.mxu0 0.0
        %625 = vmatpush1.msra.mxu0 0.0
        %626 = vmatprep.subr.mxu0 0.0
        %627 = vmatpush1.msra.mxu0 0.0
        %628 = vmatprep.mubr.f32.mxu0 0.0
        %629 = vmatmul.mubr.f32.gmra.mrb[0].mxu0 %v558
        %v630 = vpop.f32.mrb[0].mxu0
        %v631 = vadd.f32 0.0, %v630
        %v632 = vpop.f32.mrb[0].mxu0
        %633 = vdwg.mxu0
        %v634 = vmax.f32 %v631, 0.0
        %v635 = vld [vmem:[%s2] sm:$0xff]
        %v636 = vld [vmem:[%s2 + $0x8] sm:$0x1]
        %637 = vst.msk [vmem:[#allocation2 + $0x24] sm:$0x1] %vm502, 1.0
        %639 = vrot.lane.b32.xlu0 %v634, 8
        %v640 = vpop.permute.xlu0 %639
        %vm642 = vcmask 64512
        %v643 = vsel %vm642, 0.0, %v640
        %vm644 = vcmask 465920
        %v645 = vsel %vm644, %v643, 0.0
        %v646 = vlaneseq
        %v647 = vshrl.u32 %v646, 7
        %v648 = vsub.s32 0, %v647
        %v649 = vrot.slane %v635, %v648
        %v650 = vmul.f32 %v645, %v649
        %vm651 = vcmask 396288
        %652 = vst.msk [vmem:[#allocation2] sm:$0xf] %vm651, %v650
        %v653 = vlaneseq
        %v654 = vshrl.u32 %v653, 7
        %v655 = vsub.s32 1, %v654
        %v656 = vrot.slane %v635, %v655
        %658 = vrot.lane.b32.xlu0 %v656, 1
        %v659 = vpop.permute.xlu0 %658
        %v661 = vmul.f32 %v645, %v659
        %663 = vrot.lane.b32.xlu0 %v661, 127
        %v664 = vpop.permute.xlu0 %663
        %666 = vst.msk [vmem:[#allocation2 + $0x4] sm:$0xf] %vm651, %v664
        %v667 = vlaneseq
        %v668 = vshrl.u32 %v667, 7
        %v669 = vsub.s32 2, %v668
        %v670 = vrot.slane %v635, %v669
        %672 = vrot.lane.b32.xlu0 %v670, 2
        %v673 = vpop.permute.xlu0 %672
        %v675 = vmul.f32 %v645, %v673
        %677 = vrot.lane.b32.xlu0 %v675, 126
        %v678 = vpop.permute.xlu0 %677
        %680 = vst.msk [vmem:[#allocation2 + $0x8] sm:$0xf] %vm651, %v678
        %v681 = vlaneseq
        %v682 = vshrl.u32 %v681, 7
        %v683 = vsub.s32 3, %v682
        %v684 = vrot.slane %v635, %v683
        %686 = vrot.lane.b32.xlu0 %v684, 7
        %v687 = vpop.permute.xlu0 %686
        %v689 = vmul.f32 %v645, %v687
        %691 = vrot.lane.b32.xlu0 %v689, 121
        %v692 = vpop.permute.xlu0 %691
        %694 = vst.msk [vmem:[#allocation2 + $0xc] sm:$0xf] %vm651, %v692
        %v695 = vlaneseq
        %v696 = vshrl.u32 %v695, 7
        %v697 = vsub.s32 4, %v696
        %v698 = vrot.slane %v635, %v697
        %700 = vrot.lane.b32.xlu0 %v698, 8
        %v701 = vpop.permute.xlu0 %700
        %v703 = vmul.f32 %v645, %v701
        %705 = vrot.lane.b32.xlu0 %v703, 120
        %v706 = vpop.permute.xlu0 %705
        %708 = vst.msk [vmem:[#allocation2 + $0x10] sm:$0xf] %vm651, %v706
        %v709 = vlaneseq
        %v710 = vshrl.u32 %v709, 7
        %v711 = vsub.s32 5, %v710
        %v712 = vrot.slane %v635, %v711
        %714 = vrot.lane.b32.xlu0 %v712, 9
        %v715 = vpop.permute.xlu0 %714
        %v717 = vmul.f32 %v645, %v715
        %719 = vrot.lane.b32.xlu0 %v717, 119
        %v720 = vpop.permute.xlu0 %719
        %722 = vst.msk [vmem:[#allocation2 + $0x14] sm:$0xf] %vm651, %v720
        %v723 = vlaneseq
        %v724 = vshrl.u32 %v723, 7
        %v725 = vsub.s32 6, %v724
        %v726 = vrot.slane %v635, %v725
        %728 = vrot.lane.b32.xlu0 %v726, 14
        %v729 = vpop.permute.xlu0 %728
        %v731 = vmul.f32 %v645, %v729
        %733 = vrot.lane.b32.xlu0 %v731, 114
        %v734 = vpop.permute.xlu0 %733
        %736 = vst.msk [vmem:[#allocation2 + $0x18] sm:$0xf] %vm651, %v734
        %v737 = vlaneseq
        %v738 = vshrl.u32 %v737, 7
        %v739 = vsub.s32 7, %v738
        %v740 = vrot.slane %v635, %v739
        %742 = vrot.lane.b32.xlu0 %v740, 15
        %v743 = vpop.permute.xlu0 %742
        %v745 = vmul.f32 %v645, %v743
        %747 = vrot.lane.b32.xlu0 %v745, 113
        %v748 = vpop.permute.xlu0 %747
        %750 = vst.msk [vmem:[#allocation2 + $0x1c] sm:$0xf] %vm651, %v748
        %v751 = vlaneseq
        %v752 = vshrl.u32 %v751, 7
        %v753 = vsub.s32 0, %v752
        %v754 = vrot.slane %v636, %v753
        %756 = vrot.lane.b32.xlu0 %v754, 16
        %v757 = vpop.permute.xlu0 %756
        %v759 = vmul.f32 %v645, %v757
        %761 = vrot.lane.b32.xlu0 %v759, 112
        %v762 = vpop.permute.xlu0 %761
        %764 = vst.msk [vmem:[#allocation2 + $0x20] sm:$0xf] %vm651, %v762
        %v765 = vld [vmem:[%s4] sm:$0xf]
        %v766 = vld [vmem:[#allocation2] sm:$0xff]
        %v767 = vld [vmem:[#allocation2 + $0x8] sm:$0xff]
        %v768 = vld [vmem:[#allocation2 + $0x10] sm:$0xff]
        %v769 = vld [vmem:[#allocation2 + $0x18] sm:$0xff]
        %v770 = vld [vmem:[#allocation2 + $0x20] sm:$0x1f]
        %vm771 = vcmask 302080
        %v773 = vsel %vm771, %v765, 0
        %vm775 = vcmask 1044480
        %v777 = vsel %vm775, %v770, 0
        %779 = vmatprep.subr.mxu0 0.0
        %780 = vmatpush1.msra.mxu0 %v766
        %781 = vmatprep.subr.mxu0 0.0
        %782 = vmatpush1.msra.mxu0 %v767
        %783 = vmatprep.subr.mxu0 0.0
        %784 = vmatpush1.msra.mxu0 %v768
        %785 = vmatprep.subr.mxu0 0.0
        %786 = vmatpush1.msra.mxu0 %v769
        %787 = vmatprep.subr.mxu0 0.0
        %788 = vmatpush1.msra.mxu0 %v777
        %789 = vmatprep.subr.mxu0 0.0
        %790 = vmatpush1.msra.mxu0 0.0
        %791 = vmatprep.subr.mxu0 0.0
        %792 = vmatpush1.msra.mxu0 0.0
        %793 = vmatprep.subr.mxu0 0.0
        %794 = vmatpush1.msra.mxu0 0.0
        %795 = vmatprep.subr.mxu0 0.0
        %796 = vmatpush1.msra.mxu0 0.0
        %797 = vmatprep.subr.mxu0 0.0
        %798 = vmatpush1.msra.mxu0 0.0
        %799 = vmatprep.subr.mxu0 0.0
        %800 = vmatpush1.msra.mxu0 0.0
        %801 = vmatprep.subr.mxu0 0.0
        %802 = vmatpush1.msra.mxu0 0.0
        %803 = vmatprep.subr.mxu0 0.0
        %804 = vmatpush1.msra.mxu0 0.0
        %805 = vmatprep.subr.mxu0 0.0
        %806 = vmatpush1.msra.mxu0 0.0
        %807 = vmatprep.subr.mxu0 0.0
        %808 = vmatpush1.msra.mxu0 0.0
        %809 = vmatprep.subr.mxu0 0.0
        %810 = vmatpush1.msra.mxu0 0.0
        %811 = vmatprep.subr.mxu0 0.0
        %812 = vmatpush1.msra.mxu0 0.0
        %813 = vmatprep.subr.mxu0 0.0
        %814 = vmatpush1.msra.mxu0 0.0
        %815 = vmatprep.subr.mxu0 0.0
        %816 = vmatpush1.msra.mxu0 0.0
        %817 = vmatprep.subr.mxu0 0.0
        %818 = vmatpush1.msra.mxu0 0.0
        %819 = vmatprep.subr.mxu0 0.0
        %820 = vmatpush1.msra.mxu0 0.0
        %821 = vmatprep.subr.mxu0 0.0
        %822 = vmatpush1.msra.mxu0 0.0
        %823 = vmatprep.subr.mxu0 0.0
        %824 = vmatpush1.msra.mxu0 0.0
        %825 = vmatprep.subr.mxu0 0.0
        %826 = vmatpush1.msra.mxu0 0.0
        %827 = vmatprep.subr.mxu0 0.0
        %828 = vmatpush1.msra.mxu0 0.0
        %829 = vmatprep.subr.mxu0 0.0
        %830 = vmatpush1.msra.mxu0 0.0
        %831 = vmatprep.subr.mxu0 0.0
        %832 = vmatpush1.msra.mxu0 0.0
        %833 = vmatprep.subr.mxu0 0.0
        %834 = vmatpush1.msra.mxu0 0.0
        %835 = vmatprep.subr.mxu0 0.0
        %836 = vmatpush1.msra.mxu0 0.0
        %837 = vmatprep.subr.mxu0 0.0
        %838 = vmatpush1.msra.mxu0 0.0
        %839 = vmatprep.subr.mxu0 0.0
        %840 = vmatpush1.msra.mxu0 0.0
        %841 = vmatprep.subr.mxu0 0.0
        %842 = vmatpush1.msra.mxu0 0.0
        %843 = vmatprep.mubr.f32.mxu0 0.0
        %844 = vmatmul.mubr.f32.gmra.mrb[0].mxu0 %v773
        %v845 = vpop.f32.mrb[0].mxu0
        %v846 = vadd.f32 0.0, %v845
        %v847 = vpop.f32.mrb[0].mxu0
        %848 = vdwg.mxu0
        %v849 = vmax.f32 %v846, 0.0
        %850 = vst.msk [vmem:[%s215] sm:$0xf] %vm651, %v849
        %s851 = sand.u32 %s137, 1
        %s852 = scalar_lea.sflag [#allocation4], %s851
        %s853 = sand.u32 %s137, 1
        %s854 = smul.addr %s853, 4
        %s855 = scalar_lea.vmem [#allocation3], %s854
        // Predicated region
        $region41: #{tpu_custom_call.1} parent=39 // pred_check
          %p856 = pneg %p147
        $region42: #{tpu_custom_call.1} parent=39 // pred_check_branch
          %858 = sbr.rel (%p856) target = $region44
        $region43: #{tpu_custom_call.1} parent=39 // pred_region
          %s860 = ssub.s32 64, 64
          %861 = vsyncadd %s852, %s860
          %s862 = smul.addr %s19, 64
          %s863 = scalar_lea.hbm %s5, %s862
          %s865 = sshll.u32 %s855, 4
          %s866 = int_to_ptr.vmem [resolvable:$true] %s865
          %868 = dma.vmem_to_hbm [thread:$0]  %s866, 64, %s863, %s852
        $region44: #{tpu_custom_call.1} parent=39 // pred_fallthru
          _
      $region40: #{tpu_custom_call.1} parent=5 // pred_fallthru
        _
      %p869 = scmp.le.s32.totalorder 2, %s14
      // Predicated region
      $region45: #{tpu_custom_call.1} parent=5 // pred_check
        %p870 = pneg %p869
      $region46: #{tpu_custom_call.1} parent=5 // pred_check_branch
        %872 = sbr.rel (%p870) target = $region48
      $region47: #{tpu_custom_call.1} parent=5 // pred_region
        %s873 = ssub.s32 %s14, 2
        // Predicated region
        $region49: #{tpu_custom_call.1} parent=47 // pred_check
          %p874 = pneg %p153
        $region50: #{tpu_custom_call.1} parent=47 // pred_check_branch
          %876 = sbr.rel (%p874) target = $region52
        $region51: #{tpu_custom_call.1} parent=47 // pred_region
          %s877 = sand.u32 %s138, 1
          %s878 = scalar_lea.sflag [#allocation4], %s877
          %s879 = sand.u32 %s138, 1
          %s880 = smul.addr %s879, 4
          %s881 = scalar_lea.vmem [#allocation3], %s880
          %882 = dma.done %s878, 64
        $region52: #{tpu_custom_call.1} parent=47 // pred_fallthru
          _
      $region48: #{tpu_custom_call.1} parent=5 // pred_fallthru
        _
    $region6: #{tpu_custom_call.1} parent=1 // loop_footer
      %s18 = sadd.s32 1, %s14
    $region7: #{tpu_custom_call.1} parent=1 // loop_footer_branch
      %13 = sbr.rel target = $region3
    $region8: #{tpu_custom_call.1} parent=1 // loop_exit
      _
    %883 = vsyncpa [#allocation4], 1
    %s884 = scalar_lea.sflag [#allocation4], 1
    %885 = vsyncpa %s884, 1

</llo_original>
